<compile_context>
chip_gen: v7x
topology: tpu7x:2x2x1
jax: 0.10.0
libtpu: 0.0.40
codegen_flags: <defaults>
</compile_context>

<pallas_src>
import jax
import jax.numpy as jnp
from jax.experimental import pallas as pl
from jax.experimental.pallas import tpu as pltpu

BN_EPS = 1e-5
LEAKY_SLOPE = 0.01


def _mlp_kernel(x_ref, w1_ref, b1_ref, w2_ref, b2_ref, w3_ref, b3_ref, o_ref):
    # x_ref: (TB, F) in native layout.  Transpose to (F, TB) so the batch rides
    # the lane axis for the rest of the kernel (lane-dense compute + stores).
    xt = x_ref[...].T                                     # (F, TB) f32

    # layer 1: Linear(8,32) + relu          (BN1 folded into layer 2 weights)
    h1 = jnp.dot(w1_ref[...], xt.astype(jnp.bfloat16),
                 preferred_element_type=jnp.float32) + b1_ref[...]
    h1 = jnp.maximum(h1, 0.0)

    # layer 2: Linear(32,16) + leaky_relu   (BN2 folded into layer 3 weights)
    h2 = jnp.dot(w2_ref[...], h1.astype(jnp.bfloat16),
                 preferred_element_type=jnp.float32) + b2_ref[...]
    h2 = jnp.where(h2 > 0.0, h2, LEAKY_SLOPE * h2)

    # layer 3: Linear(16,1) + numerically stable sigmoid
    h3 = jnp.dot(w3_ref[...], h2.astype(jnp.bfloat16),
                 preferred_element_type=jnp.float32) + b3_ref[...]
    e = jnp.exp(-jnp.abs(h3))
    sig = jnp.where(h3 >= 0.0, 1.0 / (1.0 + e), e / (1.0 + e))
    o_ref[...] = sig.astype(o_ref.dtype)


def _prep_params(p):
    """Fold eval-mode BatchNorms into the adjacent Linears, transpose to
    (out_features, in_features), and cast matmul weights to bf16."""
    s1 = p["g1"] * jax.lax.rsqrt(p["v1"] + BN_EPS)          # (32,)
    t1 = p["be1"] - p["m1"] * s1                            # (32,)
    s2 = p["g2"] * jax.lax.rsqrt(p["v2"] + BN_EPS)          # (16,)
    t2 = p["be2"] - p["m2"] * s2                            # (16,)

    w2_eff = p["w2"] * s1[:, None]                          # (32, 16)
    b2_eff = p["b2"] + t1 @ p["w2"]                         # (16,)
    w3_eff = p["w3"] * s2[:, None]                          # (16, 1)
    b3_eff = p["b3"] + t2 @ p["w3"]                         # (1,)

    return (
        p["w1"].T.astype(jnp.bfloat16), p["b1"][:, None],   # (32, 8),  (32, 1)
        w2_eff.T.astype(jnp.bfloat16), b2_eff[:, None],     # (16, 32), (16, 1)
        w3_eff.T.astype(jnp.bfloat16), b3_eff[:, None],     # (1, 16),  (1, 1)
    )


def mlp_forward(x, params, *, block_b=8192):
    """Forward pass of the Titanic MLP as one gridded Pallas kernel.

    x: (B, input_size) float32. Returns (B, 1) float32 probabilities
    (eval-mode: running-stat BatchNorm, identity dropout).
    """
    B, F = x.shape
    x = x.astype(jnp.float32)
    w1t, b1, w2t, b2, w3t, b3 = _prep_params(params)

    # Batch block size: a multiple of 128 lanes (capped), or the full batch
    # when it fits in one block (block == full array is always layout-legal).
    tb_cap = max(128, (block_b // 128) * 128)
    if B <= tb_cap:
        tb, n_blocks = B, 1
    else:
        n_blocks = pl.cdiv(B, tb_cap)
        if n_blocks % 2:          # keep the parallel axis shardable over 2 TCs (v7x)
            n_blocks += 1
        tb = 128 * pl.cdiv(pl.cdiv(B, n_blocks), 128)
        n_blocks = pl.cdiv(B, tb)

    # VMEM budget: double-buffered (tb,F) input + (1,tb) output + f32/bf16
    # intermediates ~ 264 B/lane; 3x margin + 1 MiB base, capped at 32 MiB.
    per_lane = 2 * (F + 1) * 4 + (32 + 16) * 4
    vmem_limit = int(min(32 << 20, max(16 << 20, 3 * per_lane * tb + (1 << 20))))

    cost = pl.CostEstimate(
        flops=2 * B * (F * 32 + 32 * 16 + 16 * 1),
        transcendentals=B,
        bytes_accessed=B * (F + 1) * 4,
    )

    full = lambda a: pl.BlockSpec(a.shape, lambda i: (0, 0))

    def call(x_spec):
        return pl.pallas_call(
            _mlp_kernel,
            out_shape=jax.ShapeDtypeStruct((1, B), jnp.float32),
            grid=(n_blocks,),
            in_specs=[
                x_spec,
                full(w1t), full(b1), full(w2t), full(b2), full(w3t), full(b3),
            ],
            out_specs=pl.BlockSpec((1, tb), lambda i: (0, i)),
            compiler_params=pltpu.CompilerParams(
                dimension_semantics=("parallel",),
                vmem_limit_bytes=vmem_limit),
            cost_estimate=cost,
        )(x, w1t, b1, w2t, b2, w3t, b3)

    # Deeper input buffering hides residual DMA latency for the thin (tb, 8)
    # blocks; fall back to default double-buffering if this JAX/Mosaic version
    # does not support pipeline_mode on pallas_call BlockSpecs.
    try:
        out = call(pl.BlockSpec((tb, F), lambda i: (i, 0),
                                pipeline_mode=pl.Buffered(3)))
    except Exception:
        out = call(pl.BlockSpec((tb, F), lambda i: (i, 0)))

    return out.T                                            # (B, 1)


def init_params(key, input_size=8):
    """Deterministic PyTorch-style init: U(-1/sqrt(fan_in), 1/sqrt(fan_in))."""
    def linear(k, fan_in, fan_out):
        kw, kb = jax.random.split(k)
        bound = 1.0 / jnp.sqrt(float(fan_in))
        w = jax.random.uniform(kw, (fan_in, fan_out), jnp.float32, -bound, bound)
        b = jax.random.uniform(kb, (fan_out,), jnp.float32, -bound, bound)
        return w, b

    k1, k2, k3, k4, k5 = jax.random.split(key, 5)
    w1, b1 = linear(k1, input_size, 32)
    w2, b2 = linear(k2, 32, 16)
    w3, b3 = linear(k3, 16, 1)

    # BatchNorm1d default init (gamma=1, beta=0); perturb running stats so the
    # normalization path is actually exercised.
    m1 = 0.05 * jax.random.normal(k4, (32,), jnp.float32)
    v1 = 1.0 + 0.1 * jax.random.uniform(k4, (32,), jnp.float32)
    m2 = 0.05 * jax.random.normal(k5, (16,), jnp.float32)
    v2 = 1.0 + 0.1 * jax.random.uniform(k5, (16,), jnp.float32)

    return {
        "w1": w1, "b1": b1,
        "g1": jnp.ones((32,), jnp.float32), "be1": jnp.zeros((32,), jnp.float32),
        "m1": m1, "v1": v1,
        "w2": w2, "b2": b2,
        "g2": jnp.ones((16,), jnp.float32), "be2": jnp.zeros((16,), jnp.float32),
        "m2": m2, "v2": v2,
        "w3": w3, "b3": b3,
    }


def mlp_reference(x, p):
    """Pure-JAX f32 reference (un-folded BN path) for correctness checking."""
    h1 = jnp.maximum(x @ p["w1"] + p["b1"], 0.0)
    h1 = (h1 - p["m1"]) / jnp.sqrt(p["v1"] + BN_EPS) * p["g1"] + p["be1"]
    z2 = h1 @ p["w2"] + p["b2"]
    h2 = jnp.where(z2 > 0.0, z2, LEAKY_SLOPE * z2)
    h2 = (h2 - p["m2"]) / jnp.sqrt(p["v2"] + BN_EPS) * p["g2"] + p["be2"]
    h3 = h2 @ p["w3"] + p["b3"]
    return jax.nn.sigmoid(h3)


if __name__ == "__main__":
    key = jax.random.PRNGKey(0)
    kx, kp, kx2, kx3 = jax.random.split(key, 4)

    # bf16 matmul operands (f32 accumulation) -> loosened tolerance vs f32 ref.
    TOL = 2e-2

    B, INPUT_SIZE = 8, 8
    x = jax.random.normal(kx, (B, INPUT_SIZE), jnp.float32)
    params = init_params(kp, INPUT_SIZE)

    out = jax.block_until_ready(mlp_forward(x, params))
    ref = mlp_reference(x, params)
    assert out.shape == (B, 1), out.shape
    assert jnp.allclose(out, ref, atol=TOL, rtol=0.0), (out, ref)

    # Multi-block grid with a ragged last block (no padding anywhere).
    B2 = 300
    x2 = jax.random.normal(kx2, (B2, INPUT_SIZE), jnp.float32)
    out2 = jax.block_until_ready(mlp_forward(x2, params, block_b=128))
    ref2 = mlp_reference(x2, params)
    assert out2.shape == (B2, 1), out2.shape
    assert jnp.allclose(out2, ref2, atol=TOL, rtol=0.0), (out2, ref2)

    # Single non-aligned block through the default (large-block) path.
    B3 = 1000
    x3 = jax.random.normal(kx3, (B3, INPUT_SIZE), jnp.float32)
    out3 = jax.block_until_ready(mlp_forward(x3, params))
    ref3 = mlp_reference(x3, params)
    assert out3.shape == (B3, 1), out3.shape
    assert jnp.allclose(out3, ref3, atol=TOL, rtol=0.0), (out3, ref3)

    print("KERNEL_OK")
</pallas_src>

<mosaic_0001>
module attributes {stable_mosaic.version = 11 : i64} {
  func.func @_mlp_kernel(%arg0: i32, %arg1: memref<8x8xf32, #tpu.memory_space<vmem>>, %arg2: memref<32x8xbf16, #tpu.memory_space<vmem>>, %arg3: memref<32x1xf32, #tpu.memory_space<vmem>>, %arg4: memref<16x32xbf16, #tpu.memory_space<vmem>>, %arg5: memref<16x1xf32, #tpu.memory_space<vmem>>, %arg6: memref<1x16xbf16, #tpu.memory_space<vmem>>, %arg7: memref<1x1xf32, #tpu.memory_space<vmem>>, %arg8: memref<1x8xf32, #tpu.memory_space<vmem>>) attributes {dimension_semantics = [#tpu.dimension_semantics<parallel>], iteration_bounds = array<i64: 1>, scalar_prefetch = 0 : i64, scratch_operands = 0 : i64, tpu.core_type = #tpu.core_type<tc>, window_params = [{transform_indices = @transform_0, window_bounds = array<i64: 8, 8>}, {pipeline_mode = #tpu.pipeline_mode<synchronous>, transform_indices = @transform_1, window_bounds = array<i64: 32, 8>}, {pipeline_mode = #tpu.pipeline_mode<synchronous>, transform_indices = @transform_2, window_bounds = array<i64: 32, 1>}, {pipeline_mode = #tpu.pipeline_mode<synchronous>, transform_indices = @transform_3, window_bounds = array<i64: 16, 32>}, {pipeline_mode = #tpu.pipeline_mode<synchronous>, transform_indices = @transform_4, window_bounds = array<i64: 16, 1>}, {pipeline_mode = #tpu.pipeline_mode<synchronous>, transform_indices = @transform_5, window_bounds = array<i64: 1, 16>}, {pipeline_mode = #tpu.pipeline_mode<synchronous>, transform_indices = @transform_6, window_bounds = array<i64: 1, 1>}, {transform_indices = @transform_7, window_bounds = array<i64: 1, 8>}]} {
    %c0 = arith.constant 0 : index
    %c0_0 = arith.constant 0 : index
    %0 = vector.load %arg1[%c0, %c0_0] : memref<8x8xf32, #tpu.memory_space<vmem>>, vector<8x8xf32>
    %1 = tpu.transpose %0, [1, 0] : vector<8x8xf32> -> vector<8x8xf32>
    %c0_1 = arith.constant 0 : index
    %c0_2 = arith.constant 0 : index
    %2 = vector.load %arg2[%c0_1, %c0_2] : memref<32x8xbf16, #tpu.memory_space<vmem>>, vector<32x8xbf16>
    %3 = arith.truncf %1 : vector<8x8xf32> to vector<8x8xbf16>
    %cst = arith.constant dense<0.000000e+00> : vector<32x8xf32>
    %4 = tpu.matmul %2, %3, %cst {dimension_numbers = #tpu.dot_dimension_numbers<[1], [0], [0], [1], [0, 0, 1, 1], [], []>} : vector<32x8xbf16>, vector<8x8xbf16>, vector<32x8xf32> -> vector<32x8xf32>
    %c0_3 = arith.constant 0 : index
    %c0_4 = arith.constant 0 : index
    %5 = vector.load %arg3[%c0_3, %c0_4] : memref<32x1xf32, #tpu.memory_space<vmem>>, vector<32x1xf32>
    %6 = vector.broadcast %5 : vector<32x1xf32> to vector<32x8xf32>
    %7 = arith.addf %4, %6 : vector<32x8xf32>
    %cst_5 = arith.constant 0.000000e+00 : f32
    %8 = vector.broadcast %cst_5 : f32 to vector<32x8xf32>
    %9 = arith.maximumf %7, %8 : vector<32x8xf32>
    %c0_6 = arith.constant 0 : index
    %c0_7 = arith.constant 0 : index
    %10 = vector.load %arg4[%c0_6, %c0_7] : memref<16x32xbf16, #tpu.memory_space<vmem>>, vector<16x32xbf16>
    %11 = arith.truncf %9 : vector<32x8xf32> to vector<32x8xbf16>
    %cst_8 = arith.constant dense<0.000000e+00> : vector<16x8xf32>
    %12 = tpu.matmul %10, %11, %cst_8 {dimension_numbers = #tpu.dot_dimension_numbers<[1], [0], [0], [1], [0, 0, 1, 1], [], []>} : vector<16x32xbf16>, vector<32x8xbf16>, vector<16x8xf32> -> vector<16x8xf32>
    %c0_9 = arith.constant 0 : index
    %c0_10 = arith.constant 0 : index
    %13 = vector.load %arg5[%c0_9, %c0_10] : memref<16x1xf32, #tpu.memory_space<vmem>>, vector<16x1xf32>
    %14 = vector.broadcast %13 : vector<16x1xf32> to vector<16x8xf32>
    %15 = arith.addf %12, %14 : vector<16x8xf32>
    %cst_11 = arith.constant 0.000000e+00 : f32
    %16 = vector.broadcast %cst_11 : f32 to vector<16x8xf32>
    %17 = arith.cmpf ogt, %15, %16 : vector<16x8xf32>
    %cst_12 = arith.constant 0.00999999977 : f32
    %18 = vector.broadcast %cst_12 : f32 to vector<16x8xf32>
    %19 = arith.mulf %18, %15 : vector<16x8xf32>
    %20 = arith.select %17, %15, %19 : vector<16x8xi1>, vector<16x8xf32>
    %c0_13 = arith.constant 0 : index
    %c0_14 = arith.constant 0 : index
    %21 = vector.load %arg6[%c0_13, %c0_14] : memref<1x16xbf16, #tpu.memory_space<vmem>>, vector<1x16xbf16>
    %22 = arith.truncf %20 : vector<16x8xf32> to vector<16x8xbf16>
    %cst_15 = arith.constant dense<0.000000e+00> : vector<1x8xf32>
    %23 = tpu.matmul %21, %22, %cst_15 {dimension_numbers = #tpu.dot_dimension_numbers<[1], [0], [0], [1], [0, 0, 1, 1], [], []>} : vector<1x16xbf16>, vector<16x8xbf16>, vector<1x8xf32> -> vector<1x8xf32>
    %c0_16 = arith.constant 0 : index
    %c0_17 = arith.constant 0 : index
    %24 = vector.load %arg7[%c0_16, %c0_17] : memref<1x1xf32, #tpu.memory_space<vmem>>, vector<1x1xf32>
    %25 = vector.broadcast %24 : vector<1x1xf32> to vector<1x8xf32>
    %26 = arith.addf %23, %25 : vector<1x8xf32>
    %27 = math.absf %26 : vector<1x8xf32>
    %cst_18 = arith.constant 0.000000e+00 : f32
    %28 = vector.broadcast %cst_18 : f32 to vector<1x8xf32>
    %29 = arith.subf %28, %27 : vector<1x8xf32>
    %30 = math.exp %29 : vector<1x8xf32>
    %cst_19 = arith.constant 0.000000e+00 : f32
    %31 = vector.broadcast %cst_19 : f32 to vector<1x8xf32>
    %32 = arith.cmpf oge, %26, %31 : vector<1x8xf32>
    %cst_20 = arith.constant 1.000000e+00 : f32
    %33 = vector.broadcast %cst_20 : f32 to vector<1x8xf32>
    %34 = arith.addf %33, %30 : vector<1x8xf32>
    %cst_21 = arith.constant 1.000000e+00 : f32
    %35 = vector.broadcast %cst_21 : f32 to vector<1x8xf32>
    %36 = arith.divf %35, %34 : vector<1x8xf32>
    %cst_22 = arith.constant 1.000000e+00 : f32
    %37 = vector.broadcast %cst_22 : f32 to vector<1x8xf32>
    %38 = arith.addf %37, %30 : vector<1x8xf32>
    %39 = arith.divf %30, %38 : vector<1x8xf32>
    %40 = arith.select %32, %36, %39 : vector<1x8xi1>, vector<1x8xf32>
    %c0_23 = arith.constant 0 : index
    %c0_24 = arith.constant 0 : index
    %41 = vector.load %arg8[%c0_23, %c0_24] : memref<1x8xf32, #tpu.memory_space<vmem>>, vector<1x8xf32>
    tpu.vector_store %arg8[%c0_23, %c0_24], %40 {strides = array<i32>} : memref<1x8xf32, #tpu.memory_space<vmem>>, vector<1x8xf32>,
    return
  }
  func.func @transform_0(%arg0: i32) -> (i32, i32) {
    %c0_i32 = arith.constant 0 : i32
    %c0_i32_0 = arith.constant 0 : i32
    return %arg0, %c0_i32 : i32, i32
  }
  func.func @transform_1(%arg0: i32) -> (i32, i32) {
    %c0_i32 = arith.constant 0 : i32
    %c0_i32_0 = arith.constant 0 : i32
    %c0_i32_1 = arith.constant 0 : i32
    return %c0_i32, %c0_i32_0 : i32, i32
  }
  func.func @transform_2(%arg0: i32) -> (i32, i32) {
    %c0_i32 = arith.constant 0 : i32
    %c0_i32_0 = arith.constant 0 : i32
    %c0_i32_1 = arith.constant 0 : i32
    return %c0_i32, %c0_i32_0 : i32, i32
  }
  func.func @transform_3(%arg0: i32) -> (i32, i32) {
    %c0_i32 = arith.constant 0 : i32
    %c0_i32_0 = arith.constant 0 : i32
    %c0_i32_1 = arith.constant 0 : i32
    return %c0_i32, %c0_i32_0 : i32, i32
  }
  func.func @transform_4(%arg0: i32) -> (i32, i32) {
    %c0_i32 = arith.constant 0 : i32
    %c0_i32_0 = arith.constant 0 : i32
    %c0_i32_1 = arith.constant 0 : i32
    return %c0_i32, %c0_i32_0 : i32, i32
  }
  func.func @transform_5(%arg0: i32) -> (i32, i32) {
    %c0_i32 = arith.constant 0 : i32
    %c0_i32_0 = arith.constant 0 : i32
    %c0_i32_1 = arith.constant 0 : i32
    return %c0_i32, %c0_i32_0 : i32, i32
  }
  func.func @transform_6(%arg0: i32) -> (i32, i32) {
    %c0_i32 = arith.constant 0 : i32
    %c0_i32_0 = arith.constant 0 : i32
    %c0_i32_1 = arith.constant 0 : i32
    return %c0_i32, %c0_i32_0 : i32, i32
  }
  func.func @transform_7(%arg0: i32) -> (i32, i32) {
    %c0_i32 = arith.constant 0 : i32
    %c0_i32_0 = arith.constant 0 : i32
    return %c0_i32, %arg0 : i32, i32
  }
}

</mosaic_0001>

<llo_original>
// kernel: tpu_custom_call.1
$region0: #{tpu_custom_call.1}
  #allocation0 [shape = 'u32[]', space=smem, size = 0x4, offset = 0x4, fixed_abs, tag = 'smem constant byte address 0x4 - core index']
  #allocation1 [shape = 'u32[144,128]{1,0:T(1,128)}', space=vmem, size = 0x12000, scoped, tag = 'internal scratch']
  #allocation2 [shape = 'f32[1,1]{1,0:T(1,128)S(1)}', space=vmem, size = 0x200, scoped, tag = 'scoped memory for tpu_custom_call.1']
  %s0 = inlined_call_operand.vmem [shape: f32[8,8], index: 0, kind: input, shape index: {}]
  %s1 = inlined_call_operand.vmem [shape: bf16[32,8], index: 1, kind: input, shape index: {}]
  %s2 = inlined_call_operand.vmem [shape: f32[32,1], index: 2, kind: input, shape index: {}]
  %s3 = inlined_call_operand.vmem [shape: bf16[16,32], index: 3, kind: input, shape index: {}]
  %s4 = inlined_call_operand.vmem [shape: f32[16,1], index: 4, kind: input, shape index: {}]
  %s5 = inlined_call_operand.vmem [shape: bf16[1,16], index: 5, kind: input, shape index: {}]
  %s6 = inlined_call_operand.<no memory space> [shape: f32[1,1], index: 6, kind: input, shape index: {}]
  %s7 = inlined_call_operand.hbm [shape: f32[1,8], index: 7, kind: output, shape index: {}]
  %s8 = sld [smem:[#allocation0]]
  $region38: #{tpu_custom_call.1} parent=0
    _
  %s10 = ssub.s32 1, %s8
  %s11 = scalar_select 0, %s10, %s8
  %v12 = vstv %s6
  %13 = vst [vmem:[#allocation2] sm:$0x1] %v12
  $region1: #{tpu_custom_call.1} parent=0
    #allocation3 [shape = 'u8[512]{0}', space=vmem, size = 0x400, scoped, tag = 'output window, operand 0, single buffered']
    #allocation4 [shape = 's32[1]{0}', space=sflag, size = 0x4, scoped, tag = 'scoped memory for tpu_custom_call.1']
    %14 = vsyncpa [#allocation4], 0
    // Predicated region
    $region2: #{tpu_custom_call.1} parent=1 // pred_check
      _
    $region3: #{tpu_custom_call.1} parent=1 // pred_check_branch
      %16 = sbr.rel (0) target = $region5
    $region4: #{tpu_custom_call.1} parent=1 // pred_region
      _
    $region5: #{tpu_custom_call.1} parent=1 // pred_fallthru
      _
    // Predicated region
    $region6: #{tpu_custom_call.1} parent=1 // pred_check
      _
    $region7: #{tpu_custom_call.1} parent=1 // pred_check_branch
      %18 = sbr.rel (0) target = $region9
    $region8: #{tpu_custom_call.1} parent=1 // pred_region
      _
    $region9: #{tpu_custom_call.1} parent=1 // pred_fallthru
      _
    // Predicated region
    $region10: #{tpu_custom_call.1} parent=1 // pred_check
      _
    $region11: #{tpu_custom_call.1} parent=1 // pred_check_branch
      %20 = sbr.rel (0) target = $region13
    $region12: #{tpu_custom_call.1} parent=1 // pred_region
      _
    $region13: #{tpu_custom_call.1} parent=1 // pred_fallthru
      _
    // Predicated region
    $region14: #{tpu_custom_call.1} parent=1 // pred_check
      _
    $region15: #{tpu_custom_call.1} parent=1 // pred_check_branch
      %22 = sbr.rel (0) target = $region17
    $region16: #{tpu_custom_call.1} parent=1 // pred_region
      _
    $region17: #{tpu_custom_call.1} parent=1 // pred_fallthru
      _
    // Predicated region
    $region18: #{tpu_custom_call.1} parent=1 // pred_check
      _
    $region19: #{tpu_custom_call.1} parent=1 // pred_check_branch
      %24 = sbr.rel (0) target = $region21
    $region20: #{tpu_custom_call.1} parent=1 // pred_region
      _
    $region21: #{tpu_custom_call.1} parent=1 // pred_fallthru
      _
    // Predicated region
    $region22: #{tpu_custom_call.1} parent=1 // pred_check
      _
    $region23: #{tpu_custom_call.1} parent=1 // pred_check_branch
      %26 = sbr.rel (0) target = $region25
    $region24: #{tpu_custom_call.1} parent=1 // pred_region
      _
    $region25: #{tpu_custom_call.1} parent=1 // pred_fallthru
      _
    // Predicated region
    $region26: #{tpu_custom_call.1} parent=1 // pred_check
      _
    $region27: #{tpu_custom_call.1} parent=1 // pred_check_branch
      %28 = sbr.rel (0) target = $region29
    $region28: #{tpu_custom_call.1} parent=1 // pred_region
      _
    $region29: #{tpu_custom_call.1} parent=1 // pred_fallthru
      _
    %v30 = vld [vmem:[%s0] sm:$0xff]
    %31 = vxpose.xlu0.b32.start [1/16] %v30, 128
    %32 = vxpose.xlu0.b32.cont [2/16] 0.0, 128
    %33 = vxpose.xlu0.b32.cont [3/16] 0.0, 128
    %34 = vxpose.xlu0.b32.cont [4/16] 0.0, 128
    %35 = vxpose.xlu0.b32.cont [5/16] 0.0, 128
    %36 = vxpose.xlu0.b32.cont [6/16] 0.0, 128
    %37 = vxpose.xlu0.b32.cont [7/16] 0.0, 128
    %38 = vxpose.xlu0.b32.cont [8/16] 0.0, 128
    %39 = vxpose.xlu0.b32.cont [9/16] 0.0, 128
    %40 = vxpose.xlu0.b32.cont [10/16] 0.0, 128
    %41 = vxpose.xlu0.b32.cont [11/16] 0.0, 128
    %42 = vxpose.xlu0.b32.cont [12/16] 0.0, 128
    %43 = vxpose.xlu0.b32.cont [13/16] 0.0, 128
    %44 = vxpose.xlu0.b32.cont [14/16] 0.0, 128
    %45 = vxpose.xlu0.b32.cont [15/16] 0.0, 128
    %46 = vxpose.xlu0.b32.end [16/16] 0.0, 128
    %v47 = vpop.trf.xlu0
    %v48 = vpop.trf.xlu0
    %v49 = vpop.trf.xlu0
    %v50 = vpop.trf.xlu0
    %v51 = vpop.trf.xlu0
    %v52 = vpop.trf.xlu0
    %v53 = vpop.trf.xlu0
    %v54 = vpop.trf.xlu0
    %v55 = vpop.trf.xlu0
    %v56 = vpop.trf.xlu0
    %v57 = vpop.trf.xlu0
    %v58 = vpop.trf.xlu0
    %v59 = vpop.trf.xlu0
    %v60 = vpop.trf.xlu0
    %v61 = vpop.trf.xlu0
    %v62 = vpop.trf.xlu0
    %v63 = vld [vmem:[%s1] sm:$0xf]
    %v64 = vld [vmem:[%s1 + $0x4] sm:$0xf]
    %v65 = vld [vmem:[%s1 + $0x8] sm:$0xf]
    %v66 = vld [vmem:[%s1 + $0xc] sm:$0xf]
    %v67 = vpack.c.bf16 %v47, %v47
    %v68 = vld [vmem:[%s2] sm:$0xff]
    %v69 = vld [vmem:[%s2 + $0x8] sm:$0xff]
    %v70 = vld [vmem:[%s2 + $0x10] sm:$0xff]
    %v71 = vld [vmem:[%s2 + $0x18] sm:$0xff]
    %73 = vset.pattern.permute.xlu0 0
    %74 = vperm.xlu0 %73, %v68
    %v75 = vpop.permute.xlu0 %74
    %78 = vset.pattern.permute.xlu0 0
    %79 = vperm.xlu0 %78, %v69
    %v80 = vpop.permute.xlu0 %79
    %83 = vset.pattern.permute.xlu0 0
    %84 = vperm.xlu0 %83, %v70
    %v85 = vpop.permute.xlu0 %84
    %88 = vset.pattern.permute.xlu0 0
    %89 = vperm.xlu0 %88, %v71
    %v90 = vpop.permute.xlu0 %89
    %v96 = vunpack.c.l.b16 %v63
    %v97 = vunpack.c.l.b16 %v64
    %v98 = vunpack.c.l.b16 %v65
    %v99 = vunpack.c.l.b16 %v66
    %v100 = vpack.c.b16 %v97, %v96
    %v101 = vpack.c.b16 %v99, %v98
    %vm102 = vcmask 64512
    %v104 = vsel %vm102, %v100, 0
    %v107 = vsel %vm102, %v101, 0
    %vm109 = vcmask 1043456
    %v111 = vsel %vm109, %v67, 0
    %113 = vmatprep.subr.bf16.mxu0 0
    %114 = vmatpush1.bf16.msra.mxu0 %v111
    %115 = vmatprep.subr.bf16.mxu0 0
    %116 = vmatpush1.bf16.msra.mxu0 0
    %117 = vmatprep.subr.bf16.mxu0 0
    %118 = vmatpush1.bf16.msra.mxu0 0
    %119 = vmatprep.subr.bf16.mxu0 0
    %120 = vmatpush1.bf16.msra.mxu0 0
    %121 = vmatprep.subr.bf16.mxu0 0
    %122 = vmatpush1.bf16.msra.mxu0 0
    %123 = vmatprep.subr.bf16.mxu0 0
    %124 = vmatpush1.bf16.msra.mxu0 0
    %125 = vmatprep.subr.bf16.mxu0 0
    %126 = vmatpush1.bf16.msra.mxu0 0
    %127 = vmatprep.subr.bf16.mxu0 0
    %128 = vmatpush1.bf16.msra.mxu0 0
    %129 = vmatprep.subr.bf16.mxu0 0
    %130 = vmatpush1.bf16.msra.mxu0 0
    %131 = vmatprep.subr.bf16.mxu0 0
    %132 = vmatpush1.bf16.msra.mxu0 0
    %133 = vmatprep.subr.bf16.mxu0 0
    %134 = vmatpush1.bf16.msra.mxu0 0
    %135 = vmatprep.subr.bf16.mxu0 0
    %136 = vmatpush1.bf16.msra.mxu0 0
    %137 = vmatprep.subr.bf16.mxu0 0
    %138 = vmatpush1.bf16.msra.mxu0 0
    %139 = vmatprep.subr.bf16.mxu0 0
    %140 = vmatpush1.bf16.msra.mxu0 0
    %141 = vmatprep.subr.bf16.mxu0 0
    %142 = vmatpush1.bf16.msra.mxu0 0
    %143 = vmatprep.subr.bf16.mxu0 0
    %144 = vmatpush1.bf16.msra.mxu0 0
    %145 = vmatprep.mubr.bf16.mxu0 0
    %146 = vmatmul.mubr.bf16.gmra.mrb[0].mxu0 %v104
    %v147 = vpop.f32.mrb[0].mxu0
    %v148 = vadd.f32 %v75, %v147
    %v149 = vpop.f32.mrb[0].mxu0
    %v150 = vpop.f32.mrb[0].mxu0
    %v151 = vadd.f32 %v80, %v150
    %v152 = vpop.f32.mrb[0].mxu0
    %153 = vmatprep.mubr.bf16.mxu0 0
    %154 = vmatmul.mubr.bf16.gmra.mrb[0].mxu0 %v107
    %v155 = vpop.f32.mrb[0].mxu0
    %v156 = vadd.f32 %v85, %v155
    %v157 = vpop.f32.mrb[0].mxu0
    %v158 = vpop.f32.mrb[0].mxu0
    %v159 = vadd.f32 %v90, %v158
    %v160 = vpop.f32.mrb[0].mxu0
    %161 = vdwg.mxu0
    %v162 = vmax.f32 %v148, 0.0
    %v163 = vmax.f32 %v151, 0.0
    %v164 = vmax.f32 %v156, 0.0
    %v165 = vmax.f32 %v159, 0.0
    %v166 = vld [vmem:[%s3] sm:$0xf]
    %v167 = vld [vmem:[%s3 + $0x4] sm:$0xf]
    %v168 = vpack.c.bf16 %v163, %v162
    %v169 = vpack.c.bf16 %v165, %v164
    %v170 = vld [vmem:[%s4] sm:$0xff]
    %v171 = vld [vmem:[%s4 + $0x8] sm:$0xff]
    %173 = vset.pattern.permute.xlu0 0
    %174 = vperm.xlu0 %173, %v170
    %v175 = vpop.permute.xlu0 %174
    %178 = vset.pattern.permute.xlu0 0
    %179 = vperm.xlu0 %178, %v171
    %v180 = vpop.permute.xlu0 %179
    %v184 = vunpack.c.l.b16 %v166
    %v185 = vunpack.c.l.b16 %v167
    %v186 = vpack.c.b16 %v185, %v184
    %vm187 = vcmask 261120
    %v189 = vsel %vm187, %v186, 0
    %191 = vmatprep.subr.bf16.mxu0 0
    %192 = vmatpush1.bf16.msra.mxu0 %v168
    %193 = vmatprep.subr.bf16.mxu0 0
    %194 = vmatpush1.bf16.msra.mxu0 %v169
    %195 = vmatprep.subr.bf16.mxu0 0
    %196 = vmatpush1.bf16.msra.mxu0 0
    %197 = vmatprep.subr.bf16.mxu0 0
    %198 = vmatpush1.bf16.msra.mxu0 0
    %199 = vmatprep.subr.bf16.mxu0 0
    %200 = vmatpush1.bf16.msra.mxu0 0
    %201 = vmatprep.subr.bf16.mxu0 0
    %202 = vmatpush1.bf16.msra.mxu0 0
    %203 = vmatprep.subr.bf16.mxu0 0
    %204 = vmatpush1.bf16.msra.mxu0 0
    %205 = vmatprep.subr.bf16.mxu0 0
    %206 = vmatpush1.bf16.msra.mxu0 0
    %207 = vmatprep.subr.bf16.mxu0 0
    %208 = vmatpush1.bf16.msra.mxu0 0
    %209 = vmatprep.subr.bf16.mxu0 0
    %210 = vmatpush1.bf16.msra.mxu0 0
    %211 = vmatprep.subr.bf16.mxu0 0
    %212 = vmatpush1.bf16.msra.mxu0 0
    %213 = vmatprep.subr.bf16.mxu0 0
    %214 = vmatpush1.bf16.msra.mxu0 0
    %215 = vmatprep.subr.bf16.mxu0 0
    %216 = vmatpush1.bf16.msra.mxu0 0
    %217 = vmatprep.subr.bf16.mxu0 0
    %218 = vmatpush1.bf16.msra.mxu0 0
    %219 = vmatprep.subr.bf16.mxu0 0
    %220 = vmatpush1.bf16.msra.mxu0 0
    %221 = vmatprep.subr.bf16.mxu0 0
    %222 = vmatpush1.bf16.msra.mxu0 0
    %223 = vmatprep.mubr.bf16.mxu0 0
    %224 = vmatmul.mubr.bf16.gmra.mrb[0].mxu0 %v189
    %v225 = vpop.f32.mrb[0].mxu0
    %v226 = vadd.f32 %v175, %v225
    %v227 = vpop.f32.mrb[0].mxu0
    %v228 = vpop.f32.mrb[0].mxu0
    %v229 = vadd.f32 %v180, %v228
    %v230 = vpop.f32.mrb[0].mxu0
    %231 = vdwg.mxu0
    %vm232 = vcmp.gt.f32.partialorder %v226, 0.0
    %vm233 = vcmp.gt.f32.partialorder %v229, 0.0
    %v234 = vmul.f32 %v226, 0.01
    %v235 = vmul.f32 %v229, 0.01
    %v236 = vsel %vm232, %v226, %v234
    %v237 = vsel %vm233, %v229, %v235
    %v238 = vld [vmem:[%s5] sm:$0x1]
    %v239 = vpack.c.bf16 %v237, %v236
    %v240 = vld [vmem:[#allocation2] sm:$0x1]
    %242 = vset.pattern.permute.xlu0 0
    %243 = vperm.xlu0 %242, %v240
    %v244 = vpop.permute.xlu0 %243
    %v246 = vlaneseq
    %v247 = vshrl.u32 %v246, 7
    %v248 = vsub.s32 0, %v247
    %v249 = vrot.slane %v244, %v248
    %vm250 = vcmask 130048
    %v252 = vsel %vm250, %v238, 0
    %254 = vmatprep.subr.bf16.mxu0 0
    %255 = vmatpush1.bf16.msra.mxu0 %v239
    %256 = vmatprep.subr.bf16.mxu0 0
    %257 = vmatpush1.bf16.msra.mxu0 0
    %258 = vmatprep.subr.bf16.mxu0 0
    %259 = vmatpush1.bf16.msra.mxu0 0
    %260 = vmatprep.subr.bf16.mxu0 0
    %261 = vmatpush1.bf16.msra.mxu0 0
    %262 = vmatprep.subr.bf16.mxu0 0
    %263 = vmatpush1.bf16.msra.mxu0 0
    %264 = vmatprep.subr.bf16.mxu0 0
    %265 = vmatpush1.bf16.msra.mxu0 0
    %266 = vmatprep.subr.bf16.mxu0 0
    %267 = vmatpush1.bf16.msra.mxu0 0
    %268 = vmatprep.subr.bf16.mxu0 0
    %269 = vmatpush1.bf16.msra.mxu0 0
    %270 = vmatprep.subr.bf16.mxu0 0
    %271 = vmatpush1.bf16.msra.mxu0 0
    %272 = vmatprep.subr.bf16.mxu0 0
    %273 = vmatpush1.bf16.msra.mxu0 0
    %274 = vmatprep.subr.bf16.mxu0 0
    %275 = vmatpush1.bf16.msra.mxu0 0
    %276 = vmatprep.subr.bf16.mxu0 0
    %277 = vmatpush1.bf16.msra.mxu0 0
    %278 = vmatprep.subr.bf16.mxu0 0
    %279 = vmatpush1.bf16.msra.mxu0 0
    %280 = vmatprep.subr.bf16.mxu0 0
    %281 = vmatpush1.bf16.msra.mxu0 0
    %282 = vmatprep.subr.bf16.mxu0 0
    %283 = vmatpush1.bf16.msra.mxu0 0
    %284 = vmatprep.subr.bf16.mxu0 0
    %285 = vmatpush1.bf16.msra.mxu0 0
    %286 = vmatprep.mubr.bf16.mxu0 0
    %287 = vmatmul.mubr.bf16.gmra.mrb[0].mxu0 %v252
    %v288 = vpop.f32.mrb[0].mxu0
    %v289 = vadd.f32 %v249, %v288
    %v290 = vpop.f32.mrb[0].mxu0
    %v291 = vpop.f32.mrb[0].mxu0
    %v292 = vpop.f32.mrb[0].mxu0
    %293 = vdwg.mxu0
    %v294 = vand.u32 2147483647, %v289
    %v295 = vsub.f32 0.0, %v294
    %v296 = vmul.f32 %v295, 1.442695
    %v297 = vpow.pop %v296
    %vm298 = vcmp.ge.f32.partialorder %v289, 0.0
    %v299 = vadd.f32 %v297, 1.0
    %v300 = vrcp.pop %v299
    %v301 = vmul.f32 1.0, %v300
    %v302 = vmul.f32 %v297, %v300
    %v303 = vsel %vm298, %v301, %v302
    %vm304 = vcmask 57344
    %305 = vst.msk [vmem:[#allocation3] sm:$0x1] %vm304, %v303
    // Predicated region
    $region30: #{tpu_custom_call.1} parent=1 // pred_check
      _
    $region31: #{tpu_custom_call.1} parent=1 // pred_check_branch
      %307 = sbr.rel (0) target = $region33
    $region32: #{tpu_custom_call.1} parent=1 // pred_region
      %s309 = ssub.s32 16, 16
      %310 = vsyncadd [#allocation4], %s309
      %s312 = sshll.u32 [#allocation3], 4
      %s313 = int_to_ptr.vmem [resolvable:$true] %s312
      %315 = dma.vmem_to_hbm [thread:$0]  %s313, 16, %s7, [#allocation4]
    $region33: #{tpu_custom_call.1} parent=1 // pred_fallthru
      _
    // Predicated region
    $region34: #{tpu_custom_call.1} parent=1 // pred_check
      _
    $region35: #{tpu_custom_call.1} parent=1 // pred_check_branch
      %317 = sbr.rel (0) target = $region37
    $region36: #{tpu_custom_call.1} parent=1 // pred_region
      %318 = dma.done [#allocation4], 16
    $region37: #{tpu_custom_call.1} parent=1 // pred_fallthru
      _
    %319 = vsyncpa [#allocation4], 1

</llo_original>
